<compile_context>
chip_gen: v5e
topology: v5e:2x2
jax: 0.10.0
libtpu: 0.0.40
codegen_flags: <defaults>
</compile_context>

<pallas_src>
import jax
import jax.numpy as jnp
from jax.experimental import pallas as pl
from jax.experimental.pallas import tpu as pltpu

NEG_SLOPE = 0.01          # PyTorch nn.LeakyReLU default negative slope
_LANE = 128               # lane width
_ALIGN = 16               # batch-tile row alignment (bf16-friendly sublane pack)


def _round_up(n, m):
    return ((n + m - 1) // m) * m


def _vmem_capacity_bytes(default=64 << 20):
    """Physical VMEM per core; conservative (v7x) default if query fails."""
    try:
        info = pltpu.get_tpu_info()
        return int(getattr(info, "vmem_capacity_bytes", default))
    except Exception:
        return default


def _param_spec(shape, single_buffer):
    """BlockSpec for a grid-invariant parameter block."""
    index_map = lambda i: (0,) * len(shape)
    if single_buffer:
        # Constant index_map -> nothing to pipeline; one buffer halves the
        # parameter VMEM footprint (matters most on v7x's 64 MiB VMEM).
        return pl.BlockSpec(shape, index_map, pipeline_mode=pl.Buffered(1))
    return pl.BlockSpec(shape, index_map)


# ------------------------------- kernel -------------------------------------
def _linear_classifier_kernel(x_ref, w1_ref, b1_ref, w2_ref, b2_ref, o_ref):
    """One (TB, in_chan) batch tile per grid step.

    x_ref  : (TB, in_chan)  any float dtype (cast to bf16 for the MXU)
    w1_ref : (in_chan, hidden)  bf16     b1_ref : (1, hidden)   f32
    w2_ref : (hidden, oc_pad)   bf16     b2_ref : (1, oc_pad)   f32
    o_ref  : (TB, oc_pad)       f32      (padded cols carry zero probability)
    """
    x = x_ref[...].astype(jnp.bfloat16)

    # ---- Linear(in_chan -> hidden) + LeakyReLU (f32 accumulate) ------------
    h = jnp.dot(x, w1_ref[...], preferred_element_type=jnp.float32) + b1_ref[...]
    h = jnp.where(h > 0, h, NEG_SLOPE * h)

    # TODO(synk): Dropout(0.2) is the identity in eval/inference mode;
    # train-mode masking (pltpu.prng_random_bits + 1/0.8 rescale) not implemented.

    # ---- Linear(hidden -> out_chan) + Softmax(dim=1) ------------------------
    logits = jnp.dot(h.astype(jnp.bfloat16), w2_ref[...],
                     preferred_element_type=jnp.float32) + b2_ref[...]
    m = jnp.max(logits, axis=-1, keepdims=True)
    e = jnp.exp(logits - m)                       # padded cols: exp(-1e30) == 0
    denom = jnp.sum(e, axis=-1, keepdims=True)
    probs = e * pl.reciprocal(denom, approx=True)  # divide on the EUP slot
    o_ref[...] = probs.astype(o_ref.dtype)


# ------------------------------- wrapper -------------------------------------
def linear_classifier_forward(x, params, *, block_b=2048, min_tiles=1):
    """Pallas forward for Linear_Classifier.

    x: (B, in_chan) -> (B, out_chan) softmax probabilities (f32).
    min_tiles: set >=2 on v7x so the ("parallel",) batch axis can be sharded
    across both TensorCores; leave 1 on v5e/v6e (single TC: fewer, bigger tiles).
    """
    B, in_chan = x.shape
    hidden = params["w1"].shape[0]
    out_chan = params["w2"].shape[0]
    oc_pad = _round_up(max(out_chan, _LANE), _LANE)   # lane-dense output width

    # Pre-transposed bf16 weights (single MXU pass per layer, half the DMA
    # bytes); f32 biases.  Padded output columns get a -1e30 bias so exp()
    # underflows to exactly 0 and the softmax denominator is unchanged.
    w1T = params["w1"].T.astype(jnp.bfloat16)                        # (in, hid)
    b1 = params["b1"].reshape(1, hidden).astype(jnp.float32)
    w2T = jnp.zeros((hidden, oc_pad), jnp.bfloat16).at[:, :out_chan].set(
        params["w2"].T.astype(jnp.bfloat16))                         # (hid, ocp)
    b2 = jnp.full((1, oc_pad), -1e30, jnp.float32).at[0, :out_chan].set(
        params["b2"].astype(jnp.float32))

    # ---- VMEM-aware batch-tile selection ------------------------------------
    vmem_cap = _vmem_capacity_bytes()
    vmem_budget = (vmem_cap * 3) // 4                 # headroom for compiler scratch
    param_bytes = w1T.size * 2 + b1.size * 4 + w2T.size * 2 + b2.size * 4
    row_bytes = (2 * in_chan * x.dtype.itemsize      # double-buffered input tile
                 + 2 * oc_pad * 4                    # double-buffered output tile
                 + hidden * 6 + oc_pad * 8)          # rough in-kernel temporaries
    tb_cap = max(_ALIGN, (vmem_budget - 2 * param_bytes) // max(row_bytes, 1))
    tb_cap = max(_ALIGN, (tb_cap // _ALIGN) * _ALIGN)
    # TODO(synk): if in_chan*hidden weights ever approach the VMEM budget, add a
    # K grid axis ("arbitrary") with an f32 VMEM accumulator instead of whole
    # weight blocks.

    Bp = _round_up(B, _ALIGN)
    tb = max(_ALIGN, (min(block_b, tb_cap, Bp) // _ALIGN) * _ALIGN)
    if min_tiles > 1:
        tb = min(tb, max(_ALIGN, (Bp // (min_tiles * _ALIGN)) * _ALIGN))
    # Prefer a tile that divides the aligned batch -> no wrapper-side pad copy.
    if Bp % tb != 0:
        for cand in range(tb, _ALIGN - 1, -_ALIGN):
            if Bp % cand == 0:
                tb = cand
                break
    grid_b = pl.cdiv(Bp, tb)
    Bp = grid_b * tb
    if Bp != B:
        # Fallback for ragged batches only (a few tail rows, sliced off below).
        # TODO(synk): mask the ragged tail in-kernel instead of padding.
        x = jnp.pad(x, ((0, Bp - B), (0, 0)))

    x_spec = pl.BlockSpec((tb, in_chan), lambda i: (i, 0))
    out_spec = pl.BlockSpec((tb, oc_pad), lambda i: (i, 0))
    param_shapes = [w1T.shape, b1.shape, w2T.shape, b2.shape]

    compiler_params = pltpu.CompilerParams(
        dimension_semantics=("parallel",),
        vmem_limit_bytes=int(vmem_budget),
    )

    out = None
    for single_buffer in (True, False):
        try:
            call = pl.pallas_call(
                _linear_classifier_kernel,
                out_shape=jax.ShapeDtypeStruct((Bp, oc_pad), jnp.float32),
                grid=(grid_b,),
                in_specs=[x_spec] + [_param_spec(s, single_buffer)
                                     for s in param_shapes],
                out_specs=out_spec,
                compiler_params=compiler_params,
            )
            out = jax.block_until_ready(call(x, w1T, b1, w2T, b2))
            break
        except Exception:
            # pl.Buffered(1) on a top-level pallas_call may be unsupported on
            # some builds; retry with default (double) buffering.
            if not single_buffer:
                raise
    return out[:B, :out_chan]


# -------------------------- pure-JAX reference -------------------------------
def reference_forward(x, params):
    """Reference mirroring the kernel's bf16-MXU / f32-softmax math."""
    h = jnp.dot(x.astype(jnp.bfloat16), params["w1"].T.astype(jnp.bfloat16),
                preferred_element_type=jnp.float32) + params["b1"]
    h = jnp.where(h > 0, h, NEG_SLOPE * h)
    # Dropout(0.2) is identity at inference.
    logits = jnp.dot(h.astype(jnp.bfloat16), params["w2"].T.astype(jnp.bfloat16),
                     preferred_element_type=jnp.float32) + params["b2"]
    return jax.nn.softmax(logits, axis=1)


# ------------------------------ param init ----------------------------------
def init_params(key, *, in_chan, out_chan):
    hidden = in_chan // 2

    def uinit(k, shape, fan_in):
        bound = 1.0 / float(fan_in) ** 0.5
        return jax.random.uniform(k, shape, jnp.float32, -bound, bound)

    k1, k2, k3, k4 = jax.random.split(key, 4)
    return dict(
        w1=uinit(k1, (hidden, in_chan), in_chan),
        b1=uinit(k2, (hidden,), in_chan),
        w2=uinit(k3, (out_chan, hidden), hidden),
        b2=uinit(k4, (out_chan,), hidden),
    )


if __name__ == "__main__":
    # Small shapes consistent with the module: x is (batch, in_chan).
    B = 256
    in_chan = 64          # -> hidden = 32
    out_chan = 4

    key = jax.random.PRNGKey(0)
    pkey, xkey = jax.random.split(key)
    params = init_params(pkey, in_chan=in_chan, out_chan=out_chan)
    x = jax.random.normal(xkey, (B, in_chan), jnp.float32)

    # block_b=64 -> 4 batch tiles so the ("parallel",) grid is exercised; the
    # production default (2048) would put this whole batch in one tile.
    out = linear_classifier_forward(x, params, block_b=64)
    out = jax.block_until_ready(out)
    ref = reference_forward(x, params)

    assert out.shape == (B, out_chan), out.shape
    assert bool(jnp.all(jnp.isfinite(out)))
    # approx-reciprocal softmax: row sums are ~1 to within the EUP recip error.
    assert bool(jnp.allclose(jnp.sum(out, axis=1), 1.0, atol=5e-3))
    assert bool(jnp.allclose(out, ref, atol=5e-3, rtol=1e-2)), (
        float(jnp.max(jnp.abs(out - ref))))
    print("KERNEL_OK")
</pallas_src>

<mosaic_0001>
module attributes {stable_mosaic.version = 11 : i64} {
  func.func @_linear_classifier_kernel(%arg0: i32, %arg1: memref<64x64xf32, #tpu.memory_space<vmem>>, %arg2: memref<64x32xbf16, #tpu.memory_space<vmem>>, %arg3: memref<1x32xf32, #tpu.memory_space<vmem>>, %arg4: memref<32x128xbf16, #tpu.memory_space<vmem>>, %arg5: memref<1x128xf32, #tpu.memory_space<vmem>>, %arg6: memref<64x128xf32, #tpu.memory_space<vmem>>) attributes {dimension_semantics = [#tpu.dimension_semantics<parallel>], iteration_bounds = array<i64: 4>, scalar_prefetch = 0 : i64, scratch_operands = 0 : i64, tpu.core_type = #tpu.core_type<tc>, window_params = [{transform_indices = @transform_0, window_bounds = array<i64: 64, 64>}, {pipeline_mode = #tpu.pipeline_mode<synchronous>, transform_indices = @transform_1, window_bounds = array<i64: 64, 32>}, {pipeline_mode = #tpu.pipeline_mode<synchronous>, transform_indices = @transform_2, window_bounds = array<i64: 1, 32>}, {pipeline_mode = #tpu.pipeline_mode<synchronous>, transform_indices = @transform_3, window_bounds = array<i64: 32, 128>}, {pipeline_mode = #tpu.pipeline_mode<synchronous>, transform_indices = @transform_4, window_bounds = array<i64: 1, 128>}, {transform_indices = @transform_5, window_bounds = array<i64: 64, 128>}]} {
    %c0 = arith.constant 0 : index
    %c0_0 = arith.constant 0 : index
    %0 = vector.load %arg1[%c0, %c0_0] : memref<64x64xf32, #tpu.memory_space<vmem>>, vector<64x64xf32>
    %1 = arith.truncf %0 : vector<64x64xf32> to vector<64x64xbf16>
    %c0_1 = arith.constant 0 : index
    %c0_2 = arith.constant 0 : index
    %2 = vector.load %arg2[%c0_1, %c0_2] : memref<64x32xbf16, #tpu.memory_space<vmem>>, vector<64x32xbf16>
    %cst = arith.constant dense<0.000000e+00> : vector<64x32xf32>
    %3 = tpu.matmul %1, %2, %cst {dimension_numbers = #tpu.dot_dimension_numbers<[1], [0], [0], [1], [0, 0, 1, 1], [], []>} : vector<64x64xbf16>, vector<64x32xbf16>, vector<64x32xf32> -> vector<64x32xf32>
    %c0_3 = arith.constant 0 : index
    %c0_4 = arith.constant 0 : index
    %4 = vector.load %arg3[%c0_3, %c0_4] : memref<1x32xf32, #tpu.memory_space<vmem>>, vector<1x32xf32>
    %5 = vector.broadcast %4 : vector<1x32xf32> to vector<64x32xf32>
    %6 = arith.addf %3, %5 : vector<64x32xf32>
    %cst_5 = arith.constant 0.000000e+00 : f32
    %7 = vector.broadcast %cst_5 : f32 to vector<64x32xf32>
    %8 = arith.cmpf ogt, %6, %7 : vector<64x32xf32>
    %cst_6 = arith.constant 0.00999999977 : f32
    %9 = vector.broadcast %cst_6 : f32 to vector<64x32xf32>
    %10 = arith.mulf %9, %6 : vector<64x32xf32>
    %11 = arith.select %8, %6, %10 : vector<64x32xi1>, vector<64x32xf32>
    %12 = arith.truncf %11 : vector<64x32xf32> to vector<64x32xbf16>
    %c0_7 = arith.constant 0 : index
    %c0_8 = arith.constant 0 : index
    %13 = vector.load %arg4[%c0_7, %c0_8] : memref<32x128xbf16, #tpu.memory_space<vmem>>, vector<32x128xbf16>
    %cst_9 = arith.constant dense<0.000000e+00> : vector<64x128xf32>
    %14 = tpu.matmul %12, %13, %cst_9 {dimension_numbers = #tpu.dot_dimension_numbers<[1], [0], [0], [1], [0, 0, 1, 1], [], []>} : vector<64x32xbf16>, vector<32x128xbf16>, vector<64x128xf32> -> vector<64x128xf32>
    %c0_10 = arith.constant 0 : index
    %c0_11 = arith.constant 0 : index
    %15 = vector.load %arg5[%c0_10, %c0_11] : memref<1x128xf32, #tpu.memory_space<vmem>>, vector<1x128xf32>
    %16 = vector.broadcast %15 : vector<1x128xf32> to vector<64x128xf32>
    %17 = arith.addf %14, %16 : vector<64x128xf32>
    %cst_12 = arith.constant dense<0xFF800000> : vector<64xf32>
    %18 = vector.multi_reduction <maximumf>, %17, %cst_12 [1] : vector<64x128xf32> to vector<64xf32>
    %19 = vector.shape_cast %18 : vector<64xf32> to vector<64x1xf32>
    %20 = vector.broadcast %19 : vector<64x1xf32> to vector<64x128xf32>
    %21 = arith.subf %17, %20 : vector<64x128xf32>
    %22 = math.exp %21 : vector<64x128xf32>
    %cst_13 = arith.constant dense<0.000000e+00> : vector<64xf32>
    %23 = vector.multi_reduction <add>, %22, %cst_13 [1] : vector<64x128xf32> to vector<64xf32>
    %24 = vector.shape_cast %23 : vector<64xf32> to vector<64x1xf32>
    %25 = tpu.reciprocal %24 {approx = true} : vector<64x1xf32> -> vector<64x1xf32>
    %26 = vector.broadcast %25 : vector<64x1xf32> to vector<64x128xf32>
    %27 = arith.mulf %22, %26 : vector<64x128xf32>
    %c0_14 = arith.constant 0 : index
    %c0_15 = arith.constant 0 : index
    %28 = vector.load %arg6[%c0_14, %c0_15] : memref<64x128xf32, #tpu.memory_space<vmem>>, vector<64x128xf32>
    tpu.vector_store %arg6[%c0_14, %c0_15], %27 {strides = array<i32>} : memref<64x128xf32, #tpu.memory_space<vmem>>, vector<64x128xf32>,
    return
  }
  func.func @transform_0(%arg0: i32) -> (i32, i32) {
    %c0_i32 = arith.constant 0 : i32
    %c0_i32_0 = arith.constant 0 : i32
    return %arg0, %c0_i32 : i32, i32
  }
  func.func @transform_1(%arg0: i32) -> (i32, i32) {
    %c0_i32 = arith.constant 0 : i32
    %c0_i32_0 = arith.constant 0 : i32
    %c0_i32_1 = arith.constant 0 : i32
    return %c0_i32, %c0_i32_0 : i32, i32
  }
  func.func @transform_2(%arg0: i32) -> (i32, i32) {
    %c0_i32 = arith.constant 0 : i32
    %c0_i32_0 = arith.constant 0 : i32
    %c0_i32_1 = arith.constant 0 : i32
    return %c0_i32, %c0_i32_0 : i32, i32
  }
  func.func @transform_3(%arg0: i32) -> (i32, i32) {
    %c0_i32 = arith.constant 0 : i32
    %c0_i32_0 = arith.constant 0 : i32
    %c0_i32_1 = arith.constant 0 : i32
    return %c0_i32, %c0_i32_0 : i32, i32
  }
  func.func @transform_4(%arg0: i32) -> (i32, i32) {
    %c0_i32 = arith.constant 0 : i32
    %c0_i32_0 = arith.constant 0 : i32
    %c0_i32_1 = arith.constant 0 : i32
    return %c0_i32, %c0_i32_0 : i32, i32
  }
  func.func @transform_5(%arg0: i32) -> (i32, i32) {
    %c0_i32 = arith.constant 0 : i32
    %c0_i32_0 = arith.constant 0 : i32
    return %arg0, %c0_i32 : i32, i32
  }
}

module attributes {stable_mosaic.version = 11 : i64} {
  func.func @_linear_classifier_kernel(%arg0: i32, %arg1: memref<64x64xf32, #tpu.memory_space<vmem>>, %arg2: memref<64x32xbf16, #tpu.memory_space<vmem>>, %arg3: memref<1x32xf32, #tpu.memory_space<vmem>>, %arg4: memref<32x128xbf16, #tpu.memory_space<vmem>>, %arg5: memref<1x128xf32, #tpu.memory_space<vmem>>, %arg6: memref<64x128xf32, #tpu.memory_space<vmem>>) attributes {dimension_semantics = [#tpu.dimension_semantics<parallel>], iteration_bounds = array<i64: 4>, scalar_prefetch = 0 : i64, scratch_operands = 0 : i64, tpu.core_type = #tpu.core_type<tc>, window_params = [{transform_indices = @transform_0, window_bounds = array<i64: 64, 64>}, {pipeline_mode = #tpu.pipeline_mode<synchronous>, transform_indices = @transform_1, window_bounds = array<i64: 64, 32>}, {pipeline_mode = #tpu.pipeline_mode<synchronous>, transform_indices = @transform_2, window_bounds = array<i64: 1, 32>}, {pipeline_mode = #tpu.pipeline_mode<synchronous>, transform_indices = @transform_3, window_bounds = array<i64: 32, 128>}, {pipeline_mode = #tpu.pipeline_mode<synchronous>, transform_indices = @transform_4, window_bounds = array<i64: 1, 128>}, {transform_indices = @transform_5, window_bounds = array<i64: 64, 128>}]} {
    %c0 = arith.constant 0 : index
    %c0_0 = arith.constant 0 : index
    %0 = vector.load %arg1[%c0, %c0_0] : memref<64x64xf32, #tpu.memory_space<vmem>>, vector<64x64xf32>
    %1 = arith.truncf %0 : vector<64x64xf32> to vector<64x64xbf16>
    %c0_1 = arith.constant 0 : index
    %c0_2 = arith.constant 0 : index
    %2 = vector.load %arg2[%c0_1, %c0_2] : memref<64x32xbf16, #tpu.memory_space<vmem>>, vector<64x32xbf16>
    %cst = arith.constant dense<0.000000e+00> : vector<64x32xf32>
    %3 = tpu.matmul %1, %2, %cst {dimension_numbers = #tpu.dot_dimension_numbers<[1], [0], [0], [1], [0, 0, 1, 1], [], []>} : vector<64x64xbf16>, vector<64x32xbf16>, vector<64x32xf32> -> vector<64x32xf32>
    %c0_3 = arith.constant 0 : index
    %c0_4 = arith.constant 0 : index
    %4 = vector.load %arg3[%c0_3, %c0_4] : memref<1x32xf32, #tpu.memory_space<vmem>>, vector<1x32xf32>
    %5 = vector.broadcast %4 : vector<1x32xf32> to vector<64x32xf32>
    %6 = arith.addf %3, %5 : vector<64x32xf32>
    %cst_5 = arith.constant 0.000000e+00 : f32
    %7 = vector.broadcast %cst_5 : f32 to vector<64x32xf32>
    %8 = arith.cmpf ogt, %6, %7 : vector<64x32xf32>
    %cst_6 = arith.constant 0.00999999977 : f32
    %9 = vector.broadcast %cst_6 : f32 to vector<64x32xf32>
    %10 = arith.mulf %9, %6 : vector<64x32xf32>
    %11 = arith.select %8, %6, %10 : vector<64x32xi1>, vector<64x32xf32>
    %12 = arith.truncf %11 : vector<64x32xf32> to vector<64x32xbf16>
    %c0_7 = arith.constant 0 : index
    %c0_8 = arith.constant 0 : index
    %13 = vector.load %arg4[%c0_7, %c0_8] : memref<32x128xbf16, #tpu.memory_space<vmem>>, vector<32x128xbf16>
    %cst_9 = arith.constant dense<0.000000e+00> : vector<64x128xf32>
    %14 = tpu.matmul %12, %13, %cst_9 {dimension_numbers = #tpu.dot_dimension_numbers<[1], [0], [0], [1], [0, 0, 1, 1], [], []>} : vector<64x32xbf16>, vector<32x128xbf16>, vector<64x128xf32> -> vector<64x128xf32>
    %c0_10 = arith.constant 0 : index
    %c0_11 = arith.constant 0 : index
    %15 = vector.load %arg5[%c0_10, %c0_11] : memref<1x128xf32, #tpu.memory_space<vmem>>, vector<1x128xf32>
    %16 = vector.broadcast %15 : vector<1x128xf32> to vector<64x128xf32>
    %17 = arith.addf %14, %16 : vector<64x128xf32>
    %cst_12 = arith.constant dense<0xFF800000> : vector<64xf32>
    %18 = vector.multi_reduction <maximumf>, %17, %cst_12 [1] : vector<64x128xf32> to vector<64xf32>
    %19 = vector.shape_cast %18 : vector<64xf32> to vector<64x1xf32>
    %20 = vector.broadcast %19 : vector<64x1xf32> to vector<64x128xf32>
    %21 = arith.subf %17, %20 : vector<64x128xf32>
    %22 = math.exp %21 : vector<64x128xf32>
    %cst_13 = arith.constant dense<0.000000e+00> : vector<64xf32>
    %23 = vector.multi_reduction <add>, %22, %cst_13 [1] : vector<64x128xf32> to vector<64xf32>
    %24 = vector.shape_cast %23 : vector<64xf32> to vector<64x1xf32>
    %25 = tpu.reciprocal %24 {approx = true} : vector<64x1xf32> -> vector<64x1xf32>
    %26 = vector.broadcast %25 : vector<64x1xf32> to vector<64x128xf32>
    %27 = arith.mulf %22, %26 : vector<64x128xf32>
    %c0_14 = arith.constant 0 : index
    %c0_15 = arith.constant 0 : index
    %28 = vector.load %arg6[%c0_14, %c0_15] : memref<64x128xf32, #tpu.memory_space<vmem>>, vector<64x128xf32>
    tpu.vector_store %arg6[%c0_14, %c0_15], %27 {strides = array<i32>} : memref<64x128xf32, #tpu.memory_space<vmem>>, vector<64x128xf32>,
    return
  }
  func.func @transform_0(%arg0: i32) -> (i32, i32) {
    %c0_i32 = arith.constant 0 : i32
    %c0_i32_0 = arith.constant 0 : i32
    return %arg0, %c0_i32 : i32, i32
  }
  func.func @transform_1(%arg0: i32) -> (i32, i32) {
    %c0_i32 = arith.constant 0 : i32
    %c0_i32_0 = arith.constant 0 : i32
    %c0_i32_1 = arith.constant 0 : i32
    return %c0_i32, %c0_i32_0 : i32, i32
  }
  func.func @transform_2(%arg0: i32) -> (i32, i32) {
    %c0_i32 = arith.constant 0 : i32
    %c0_i32_0 = arith.constant 0 : i32
    %c0_i32_1 = arith.constant 0 : i32
    return %c0_i32, %c0_i32_0 : i32, i32
  }
  func.func @transform_3(%arg0: i32) -> (i32, i32) {
    %c0_i32 = arith.constant 0 : i32
    %c0_i32_0 = arith.constant 0 : i32
    %c0_i32_1 = arith.constant 0 : i32
    return %c0_i32, %c0_i32_0 : i32, i32
  }
  func.func @transform_4(%arg0: i32) -> (i32, i32) {
    %c0_i32 = arith.constant 0 : i32
    %c0_i32_0 = arith.constant 0 : i32
    %c0_i32_1 = arith.constant 0 : i32
    return %c0_i32, %c0_i32_0 : i32, i32
  }
  func.func @transform_5(%arg0: i32) -> (i32, i32) {
    %c0_i32 = arith.constant 0 : i32
    %c0_i32_0 = arith.constant 0 : i32
    return %arg0, %c0_i32 : i32, i32
  }
}

</mosaic_0001>

<llo_original>
// kernel: tpu_custom_call.1
$region0: #{tpu_custom_call.1}
  #allocation0 [shape = 'u32[]', space=smem, size = 0x4, offset = 0x4, fixed_abs, tag = 'smem constant byte address 0x4 - core index']
  #allocation1 [shape = 'u32[72,128]{1,0:T(1,128)}', space=vmem, size = 0x9000, scoped, tag = 'internal scratch']
  %s0 = inlined_call_operand.vmem [shape: f32[256,64], index: 0, kind: input, shape index: {}]
  %s1 = inlined_call_operand.vmem [shape: bf16[64,32], index: 1, kind: input, shape index: {}]
  %s2 = inlined_call_operand.vmem [shape: f32[1,32], index: 2, kind: input, shape index: {}]
  %s3 = inlined_call_operand.vmem [shape: bf16[32,128], index: 3, kind: input, shape index: {}]
  %s4 = inlined_call_operand.vmem [shape: f32[1,128], index: 4, kind: input, shape index: {}]
  %s5 = inlined_call_operand.hbm [shape: f32[256,128], index: 5, kind: output, shape index: {}]
  %s6 = sld [smem:[#allocation0]]
  $region53: #{tpu_custom_call.1} parent=0
    _
  %s8 = ssub.s32 1, %s6
  %s9 = scalar_select 0, %s8, %s6
  $region1: #{tpu_custom_call.1} parent=0
    #allocation2 [shape = 'u8[65536]{0}', space=vmem, size = 0x10000, scoped, tag = 'output window, operand 0']
    #allocation3 [shape = 's32[2]{0}', space=sflag, size = 0x8, scoped, tag = 'scoped memory for tpu_custom_call.1']
    %10 = vsyncpa [#allocation3], 0
    %s11 = scalar_lea.sflag [#allocation3], 1
    %12 = vsyncpa %s11, 0
    loop: start=0, step=1, limit=6
    $region2: #{tpu_custom_call.1} parent=1 // loop_pre_header
      _
    $region3: #{tpu_custom_call.1} parent=1 // loop_header
      %s14 = sphi 0, %s18
      %p15 = scmp.ge.s32.totalorder %s14, 6
      %s24 = sphi 0, %s26
      %s27 = sphi 0, %s24
      %s28 = sphi 0, %s27
      %s44 = sphi 0, %s28
      %s48 = sphi 0, %s48
      %s50 = sphi 0, %s48
      %s51 = sphi 0, %s50
      %s65 = sphi 0, %s51
      %s69 = sphi 0, %s69
      %s71 = sphi 0, %s69
      %s72 = sphi 0, %s71
      %s86 = sphi 0, %s72
      %s90 = sphi 0, %s90
      %s92 = sphi 0, %s90
      %s93 = sphi 0, %s92
      %s107 = sphi 0, %s93
      %s111 = sphi 0, %s111
      %s113 = sphi 0, %s111
      %s114 = sphi 0, %s113
      %s128 = sphi 0, %s114
      %s134 = sphi 0, %s136
      %s137 = sphi 0, %s134
      %s138 = sphi 0, %s137
      %s154 = sphi 0, %s138
    $region4: #{tpu_custom_call.1} parent=1 // loop_header_branch
      %17 = sbr.rel (%p15) target = $region8
    $region5: #{tpu_custom_call.1} parent=1 // loop_body
      %s19 = ssub.s32 %s14, 1
      %s20 = ssub.s32 %s14, 2
      %s21 = sadd.s32 %s14, 1
      %s22 = ssub.s32 %s14, %s21
      %p23 = scmp.eq.s32.totalorder %s22, 0
      %s25 = sadd.s32 %s24, 1
      %s26 = scalar_select %p23, %s24, %s25
      %p29 = pneg %p23
      %p30 = scmp.eq.s32.totalorder %s14, 3
      %p31 = por %p29, %p30
      %p32 = scmp.ne.s32.totalorder %s24, %s27
      %p33 = scmp.eq.s32.totalorder %s14, 0
      %p34 = por %p32, %p33
      %p35 = scmp.ne.s32.totalorder %s24, %s27
      %p36 = scmp.eq.s32.totalorder %s19, 3
      %p37 = por %p35, %p36
      %p38 = scmp.ne.s32.totalorder %s27, %s28
      %p39 = scmp.eq.s32.totalorder %s19, 0
      %p40 = por %p38, %p39
      %p41 = scmp.ne.s32.totalorder %s27, %s28
      %p42 = scmp.eq.s32.totalorder %s20, 3
      %p43 = por %p41, %p42
      %p45 = scmp.ne.s32.totalorder %s28, %s44
      %p46 = scmp.eq.s32.totalorder %s20, 0
      %p47 = por %p45, %p46
      %s49 = sadd.s32 %s48, 1
      %p52 = scmp.eq.s32.totalorder %s14, 3
      %p53 = scmp.ne.s32.totalorder %s48, %s50
      %p54 = scmp.eq.s32.totalorder %s14, 0
      %p55 = por %p53, %p54
      %p56 = scmp.ne.s32.totalorder %s48, %s50
      %p57 = scmp.eq.s32.totalorder %s19, 3
      %p58 = por %p56, %p57
      %p59 = scmp.ne.s32.totalorder %s50, %s51
      %p60 = scmp.eq.s32.totalorder %s19, 0
      %p61 = por %p59, %p60
      %p62 = scmp.ne.s32.totalorder %s50, %s51
      %p63 = scmp.eq.s32.totalorder %s20, 3
      %p64 = por %p62, %p63
      %p66 = scmp.ne.s32.totalorder %s51, %s65
      %p67 = scmp.eq.s32.totalorder %s20, 0
      %p68 = por %p66, %p67
      %s70 = sadd.s32 %s69, 1
      %p73 = scmp.eq.s32.totalorder %s14, 3
      %p74 = scmp.ne.s32.totalorder %s69, %s71
      %p75 = scmp.eq.s32.totalorder %s14, 0
      %p76 = por %p74, %p75
      %p77 = scmp.ne.s32.totalorder %s69, %s71
      %p78 = scmp.eq.s32.totalorder %s19, 3
      %p79 = por %p77, %p78
      %p80 = scmp.ne.s32.totalorder %s71, %s72
      %p81 = scmp.eq.s32.totalorder %s19, 0
      %p82 = por %p80, %p81
      %p83 = scmp.ne.s32.totalorder %s71, %s72
      %p84 = scmp.eq.s32.totalorder %s20, 3
      %p85 = por %p83, %p84
      %p87 = scmp.ne.s32.totalorder %s72, %s86
      %p88 = scmp.eq.s32.totalorder %s20, 0
      %p89 = por %p87, %p88
      %s91 = sadd.s32 %s90, 1
      %p94 = scmp.eq.s32.totalorder %s14, 3
      %p95 = scmp.ne.s32.totalorder %s90, %s92
      %p96 = scmp.eq.s32.totalorder %s14, 0
      %p97 = por %p95, %p96
      %p98 = scmp.ne.s32.totalorder %s90, %s92
      %p99 = scmp.eq.s32.totalorder %s19, 3
      %p100 = por %p98, %p99
      %p101 = scmp.ne.s32.totalorder %s92, %s93
      %p102 = scmp.eq.s32.totalorder %s19, 0
      %p103 = por %p101, %p102
      %p104 = scmp.ne.s32.totalorder %s92, %s93
      %p105 = scmp.eq.s32.totalorder %s20, 3
      %p106 = por %p104, %p105
      %p108 = scmp.ne.s32.totalorder %s93, %s107
      %p109 = scmp.eq.s32.totalorder %s20, 0
      %p110 = por %p108, %p109
      %s112 = sadd.s32 %s111, 1
      %p115 = scmp.eq.s32.totalorder %s14, 3
      %p116 = scmp.ne.s32.totalorder %s111, %s113
      %p117 = scmp.eq.s32.totalorder %s14, 0
      %p118 = por %p116, %p117
      %p119 = scmp.ne.s32.totalorder %s111, %s113
      %p120 = scmp.eq.s32.totalorder %s19, 3
      %p121 = por %p119, %p120
      %p122 = scmp.ne.s32.totalorder %s113, %s114
      %p123 = scmp.eq.s32.totalorder %s19, 0
      %p124 = por %p122, %p123
      %p125 = scmp.ne.s32.totalorder %s113, %s114
      %p126 = scmp.eq.s32.totalorder %s20, 3
      %p127 = por %p125, %p126
      %p129 = scmp.ne.s32.totalorder %s114, %s128
      %p130 = scmp.eq.s32.totalorder %s20, 0
      %p131 = por %p129, %p130
      %s132 = ssub.s32 %s14, %s21
      %p133 = scmp.eq.s32.totalorder %s132, 0
      %s135 = sadd.s32 %s134, 1
      %s136 = scalar_select %p133, %s134, %s135
      %p139 = pneg %p133
      %p140 = scmp.eq.s32.totalorder %s14, 3
      %p141 = por %p139, %p140
      %p142 = scmp.ne.s32.totalorder %s134, %s137
      %p143 = scmp.eq.s32.totalorder %s14, 0
      %p144 = por %p142, %p143
      %p145 = scmp.ne.s32.totalorder %s134, %s137
      %p146 = scmp.eq.s32.totalorder %s19, 3
      %p147 = por %p145, %p146
      %p148 = scmp.ne.s32.totalorder %s137, %s138
      %p149 = scmp.eq.s32.totalorder %s19, 0
      %p150 = por %p148, %p149
      %p151 = scmp.ne.s32.totalorder %s137, %s138
      %p152 = scmp.eq.s32.totalorder %s20, 3
      %p153 = por %p151, %p152
      %p155 = scmp.ne.s32.totalorder %s138, %s154
      %p156 = scmp.eq.s32.totalorder %s20, 0
      %p157 = por %p155, %p156
      %p158 = scmp.le.s32.totalorder 1, %s14
      %p159 = scmp.lt.s32.totalorder %s14, 5
      %p160 = pnand %p158, %p159
      %p161 = pneg %p160
      // Predicated region
      $region9: #{tpu_custom_call.1} parent=5 // pred_check
        _
      $region10: #{tpu_custom_call.1} parent=5 // pred_check_branch
        %163 = sbr.rel (%p160) target = $region12
      $region11: #{tpu_custom_call.1} parent=5 // pred_region
        %s164 = ssub.s32 %s14, 1
        // Predicated region
        $region13: #{tpu_custom_call.1} parent=11 // pred_check
          %p165 = pneg %p61
        $region14: #{tpu_custom_call.1} parent=11 // pred_check_branch
          %167 = sbr.rel (%p165) target = $region16
        $region15: #{tpu_custom_call.1} parent=11 // pred_region
          _
        $region16: #{tpu_custom_call.1} parent=11 // pred_fallthru
          _
        // Predicated region
        $region17: #{tpu_custom_call.1} parent=11 // pred_check
          %p168 = pneg %p82
        $region18: #{tpu_custom_call.1} parent=11 // pred_check_branch
          %170 = sbr.rel (%p168) target = $region20
        $region19: #{tpu_custom_call.1} parent=11 // pred_region
          _
        $region20: #{tpu_custom_call.1} parent=11 // pred_fallthru
          _
        // Predicated region
        $region21: #{tpu_custom_call.1} parent=11 // pred_check
          %p171 = pneg %p103
        $region22: #{tpu_custom_call.1} parent=11 // pred_check_branch
          %173 = sbr.rel (%p171) target = $region24
        $region23: #{tpu_custom_call.1} parent=11 // pred_region
          _
        $region24: #{tpu_custom_call.1} parent=11 // pred_fallthru
          _
        // Predicated region
        $region25: #{tpu_custom_call.1} parent=11 // pred_check
          %p174 = pneg %p124
        $region26: #{tpu_custom_call.1} parent=11 // pred_check_branch
          %176 = sbr.rel (%p174) target = $region28
        $region27: #{tpu_custom_call.1} parent=11 // pred_region
          _
        $region28: #{tpu_custom_call.1} parent=11 // pred_fallthru
          _
      $region12: #{tpu_custom_call.1} parent=5 // pred_fallthru
        _
      %p177 = scmp.lt.s32.totalorder %s14, 4
      // Predicated region
      $region29: #{tpu_custom_call.1} parent=5 // pred_check
        %p178 = pneg %p177
      $region30: #{tpu_custom_call.1} parent=5 // pred_check_branch
        %180 = sbr.rel (%p178) target = $region32
      $region31: #{tpu_custom_call.1} parent=5 // pred_region
        // Predicated region
        $region33: #{tpu_custom_call.1} parent=31 // pred_check
          %p181 = pneg %p34
        $region34: #{tpu_custom_call.1} parent=31 // pred_check_branch
          %183 = sbr.rel (%p181) target = $region36
        $region35: #{tpu_custom_call.1} parent=31 // pred_region
          %s184 = smul.u32 8, %s14
          %p185 = scmp.lt.s32.totalorder %s184, 31
          %s186 = scalar_select %p185, %s184, 31
          %s187 = smul.addr %s186, 8
          %s188 = scalar_lea.vmem %s0, %s187
          %s189 = smul.u32 8, %s14
        $region36: #{tpu_custom_call.1} parent=31 // pred_fallthru
          _
      $region32: #{tpu_custom_call.1} parent=5 // pred_fallthru
        _
      %p190 = scmp.le.s32.totalorder 1, %s14
      %p191 = scmp.lt.s32.totalorder %s14, 5
      %p192 = pnand %p190, %p191
      %p193 = pneg %p192
      // Predicated region
      $region37: #{tpu_custom_call.1} parent=5 // pred_check
        _
      $region38: #{tpu_custom_call.1} parent=5 // pred_check_branch
        %195 = sbr.rel (%p192) target = $region40
      $region39: #{tpu_custom_call.1} parent=5 // pred_region
        %s196 = ssub.s32 %s14, 1
        %s197 = smul.u32 8, %s19
        %p198 = scmp.lt.s32.totalorder %s197, 31
        %s199 = scalar_select %p198, %s197, 31
        %s200 = smul.addr %s199, 8
        %s201 = scalar_lea.vmem %s0, %s200
        %p202 = pneg %p40
        %p203 = pneg %p37
        %p204 = pneg %p61
        %p205 = pneg %p58
        %p206 = pneg %p82
        %p207 = pneg %p79
        %p208 = pneg %p103
        %p209 = pneg %p100
        %p210 = pneg %p124
        %p211 = pneg %p121
        %p212 = pneg %p150
        %p213 = pneg %p147
        %s214 = sand.u32 %s137, 1
        %s215 = scalar_lea.sflag [#allocation3], %s214
        %s216 = sand.u32 %s137, 1
        %s217 = smul.addr %s216, 64
        %s218 = scalar_lea.vmem [#allocation2], %s217
        %s219 = smul.u32 8, %s19
        %p220 = scmp.lt.s32.totalorder %s219, 31
        %s221 = scalar_select %p220, %s219, 31
        %s222 = smul.addr %s221, 8
        %s223 = scalar_lea.vmem %s0, %s222
        %s224 = smul.u32 8, %s19
        %s225 = smul.u32 8, %s19
        %v227 = vld [vmem:[%s223] sm:$0xff]
        %v228 = vld [vmem:[%s223 + $0x8] sm:$0xff]
        %v229 = vld [vmem:[%s223 + $0x10] sm:$0xff]
        %v230 = vld [vmem:[%s223 + $0x18] sm:$0xff]
        %v231 = vld [vmem:[%s223 + $0x20] sm:$0xff]
        %v232 = vld [vmem:[%s223 + $0x28] sm:$0xff]
        %v233 = vld [vmem:[%s223 + $0x30] sm:$0xff]
        %v234 = vld [vmem:[%s223 + $0x38] sm:$0xff]
        %v235 = vpack.c.bf16 %v228, %v227
        %v236 = vpack.c.bf16 %v230, %v229
        %v237 = vpack.c.bf16 %v232, %v231
        %v238 = vpack.c.bf16 %v234, %v233
        %v239 = vld [vmem:[%s1] sm:$0xf]
        %v240 = vld [vmem:[%s1 + $0x4] sm:$0xf]
        %v241 = vld [vmem:[%s1 + $0x8] sm:$0xf]
        %v242 = vld [vmem:[%s1 + $0xc] sm:$0xf]
        %v243 = vld [vmem:[%s1 + $0x10] sm:$0xf]
        %v244 = vld [vmem:[%s1 + $0x14] sm:$0xf]
        %v245 = vld [vmem:[%s1 + $0x18] sm:$0xf]
        %v246 = vld [vmem:[%s1 + $0x1c] sm:$0xf]
        %v247 = vld [vmem:[%s2] sm:$0x1]
        %v249 = vperm.slane %v247, 0
        %v259 = vunpack.c.l.b16 %v239
        %v260 = vunpack.c.l.b16 %v240
        %v261 = vunpack.c.l.b16 %v241
        %v262 = vunpack.c.l.b16 %v242
        %v263 = vunpack.c.l.b16 %v243
        %v264 = vunpack.c.l.b16 %v244
        %v265 = vunpack.c.l.b16 %v245
        %v266 = vunpack.c.l.b16 %v246
        %v267 = vpack.c.b16 %v260, %v259
        %v268 = vpack.c.b16 %v262, %v261
        %v269 = vpack.c.b16 %v264, %v263
        %v270 = vpack.c.b16 %v266, %v265
        %vm275 = vcmask 523264
        %v277 = vsel %vm275, %v235, 0
        %v280 = vsel %vm275, %v236, 0
        %v283 = vsel %vm275, %v237, 0
        %v286 = vsel %vm275, %v238, 0
        %288 = vmatpush.bf16.msra.mxu0 0
        %289 = vmatpush.bf16.msra.mxu0 0
        %290 = vmatpush.bf16.msra.mxu0 0
        %291 = vmatpush.bf16.msra.mxu0 0
        %292 = vmatpush.bf16.msra.mxu0 %v270
        %293 = vmatpush.bf16.msra.mxu0 %v269
        %294 = vmatpush.bf16.msra.mxu0 %v268
        %295 = vmatpush.bf16.msra.mxu0 %v267
        %296 = vmatmul.bf16.gmra.mxu0 %v277
        %v297 = vpop.f32.mrf.mxu0
        %v298 = vadd.f32 %v249, %v297
        %v299 = vpop.f32.mrf.mxu0
        %v300 = vadd.f32 %v249, %v299
        %301 = vmatmul.bf16.gmra.mxu0 %v280
        %v302 = vpop.f32.mrf.mxu0
        %v303 = vadd.f32 %v249, %v302
        %v304 = vpop.f32.mrf.mxu0
        %v305 = vadd.f32 %v249, %v304
        %306 = vmatmul.bf16.gmra.mxu0 %v283
        %v307 = vpop.f32.mrf.mxu0
        %v308 = vadd.f32 %v249, %v307
        %v309 = vpop.f32.mrf.mxu0
        %v310 = vadd.f32 %v249, %v309
        %311 = vmatmul.bf16.gmra.mxu0 %v286
        %v312 = vpop.f32.mrf.mxu0
        %v313 = vadd.f32 %v249, %v312
        %v314 = vpop.f32.mrf.mxu0
        %v315 = vadd.f32 %v249, %v314
        %316 = vdwg.mxu0
        %vm317 = vcmp.gt.f32.partialorder %v298, 0.0
        %vm318 = vcmp.gt.f32.partialorder %v300, 0.0
        %vm319 = vcmp.gt.f32.partialorder %v303, 0.0
        %vm320 = vcmp.gt.f32.partialorder %v305, 0.0
        %vm321 = vcmp.gt.f32.partialorder %v308, 0.0
        %vm322 = vcmp.gt.f32.partialorder %v310, 0.0
        %vm323 = vcmp.gt.f32.partialorder %v313, 0.0
        %vm324 = vcmp.gt.f32.partialorder %v315, 0.0
        %v325 = vmul.f32 %v298, 0.01
        %v326 = vmul.f32 %v300, 0.01
        %v327 = vmul.f32 %v303, 0.01
        %v328 = vmul.f32 %v305, 0.01
        %v329 = vmul.f32 %v308, 0.01
        %v330 = vmul.f32 %v310, 0.01
        %v331 = vmul.f32 %v313, 0.01
        %v332 = vmul.f32 %v315, 0.01
        %v333 = vsel %vm317, %v298, %v325
        %v334 = vsel %vm318, %v300, %v326
        %v335 = vsel %vm319, %v303, %v327
        %v336 = vsel %vm320, %v305, %v328
        %v337 = vsel %vm321, %v308, %v329
        %v338 = vsel %vm322, %v310, %v330
        %v339 = vsel %vm323, %v313, %v331
        %v340 = vsel %vm324, %v315, %v332
        %v341 = vpack.c.bf16 %v334, %v333
        %v342 = vpack.c.bf16 %v336, %v335
        %v343 = vpack.c.bf16 %v338, %v337
        %v344 = vpack.c.bf16 %v340, %v339
        %v345 = vld [vmem:[%s3] sm:$0xf]
        %v346 = vld [vmem:[%s3 + $0x4] sm:$0xf]
        %v347 = vld [vmem:[%s3 + $0x8] sm:$0xf]
        %v348 = vld [vmem:[%s3 + $0xc] sm:$0xf]
        %v349 = vld [vmem:[%s4] sm:$0x1]
        %v351 = vperm.slane %v349, 0
        %v357 = vunpack.c.l.b16 %v345
        %v358 = vunpack.c.l.b16 %v346
        %v359 = vunpack.c.l.b16 %v347
        %v360 = vunpack.c.l.b16 %v348
        %v361 = vpack.c.b16 %v358, %v357
        %v362 = vpack.c.b16 %v360, %v359
        %vm365 = vcmask 261120
        %v367 = vsel %vm365, %v341, 0
        %v370 = vsel %vm365, %v342, 0
        %v373 = vsel %vm365, %v343, 0
        %v376 = vsel %vm365, %v344, 0
        %378 = vmatpush.bf16.msra.mxu0 0
        %379 = vmatpush.bf16.msra.mxu0 0
        %380 = vmatpush.bf16.msra.mxu0 0
        %381 = vmatpush.bf16.msra.mxu0 0
        %382 = vmatpush.bf16.msra.mxu0 0
        %383 = vmatpush.bf16.msra.mxu0 0
        %384 = vmatpush.bf16.msra.mxu0 %v362
        %385 = vmatpush.bf16.msra.mxu0 %v361
        %386 = vmatmul.bf16.gmra.mxu0 %v367
        %v387 = vpop.f32.mrf.mxu0
        %v388 = vadd.f32 %v351, %v387
        %v389 = vpop.f32.mrf.mxu0
        %v390 = vadd.f32 %v351, %v389
        %391 = vmatmul.bf16.gmra.mxu0 %v370
        %v392 = vpop.f32.mrf.mxu0
        %v393 = vadd.f32 %v351, %v392
        %v394 = vpop.f32.mrf.mxu0
        %v395 = vadd.f32 %v351, %v394
        %396 = vmatmul.bf16.gmra.mxu0 %v373
        %v397 = vpop.f32.mrf.mxu0
        %v398 = vadd.f32 %v351, %v397
        %v399 = vpop.f32.mrf.mxu0
        %v400 = vadd.f32 %v351, %v399
        %401 = vmatmul.bf16.gmra.mxu0 %v376
        %v402 = vpop.f32.mrf.mxu0
        %v403 = vadd.f32 %v351, %v402
        %v404 = vpop.f32.mrf.mxu0
        %v405 = vadd.f32 %v351, %v404
        %406 = vdwg.mxu0
        %407 = vmax.xlane.f32.xlu0 %v388
        %v408 = vpop.xlane.xlu0 %407
        %409 = vmax.xlane.f32.xlu0 %v390
        %v410 = vpop.xlane.xlu0 %409
        %411 = vmax.xlane.f32.xlu0 %v393
        %v412 = vpop.xlane.xlu0 %411
        %413 = vmax.xlane.f32.xlu0 %v395
        %v414 = vpop.xlane.xlu0 %413
        %415 = vmax.xlane.f32.xlu0 %v398
        %v416 = vpop.xlane.xlu0 %415
        %417 = vmax.xlane.f32.xlu0 %v400
        %v418 = vpop.xlane.xlu0 %417
        %419 = vmax.xlane.f32.xlu0 %v403
        %v420 = vpop.xlane.xlu0 %419
        %421 = vmax.xlane.f32.xlu0 %v405
        %v422 = vpop.xlane.xlu0 %421
        %v423 = vsub.f32 %v388, %v408
        %v424 = vsub.f32 %v390, %v410
        %v425 = vsub.f32 %v393, %v412
        %v426 = vsub.f32 %v395, %v414
        %v427 = vsub.f32 %v398, %v416
        %v428 = vsub.f32 %v400, %v418
        %v429 = vsub.f32 %v403, %v420
        %v430 = vsub.f32 %v405, %v422
        %v431 = vmul.f32 %v423, 1.442695
        %v432 = vpow.pop %v431
        %v433 = vmul.f32 %v424, 1.442695
        %v434 = vpow.pop %v433
        %v435 = vmul.f32 %v425, 1.442695
        %v436 = vpow.pop %v435
        %v437 = vmul.f32 %v426, 1.442695
        %v438 = vpow.pop %v437
        %v439 = vmul.f32 %v427, 1.442695
        %v440 = vpow.pop %v439
        %v441 = vmul.f32 %v428, 1.442695
        %v442 = vpow.pop %v441
        %v443 = vmul.f32 %v429, 1.442695
        %v444 = vpow.pop %v443
        %v445 = vmul.f32 %v430, 1.442695
        %v446 = vpow.pop %v445
        %447 = vadd.xlane.f32.xlu0 %v432
        %v448 = vpop.xlane.xlu0 %447
        %449 = vadd.xlane.f32.xlu0 %v434
        %v450 = vpop.xlane.xlu0 %449
        %451 = vadd.xlane.f32.xlu0 %v436
        %v452 = vpop.xlane.xlu0 %451
        %453 = vadd.xlane.f32.xlu0 %v438
        %v454 = vpop.xlane.xlu0 %453
        %455 = vadd.xlane.f32.xlu0 %v440
        %v456 = vpop.xlane.xlu0 %455
        %457 = vadd.xlane.f32.xlu0 %v442
        %v458 = vpop.xlane.xlu0 %457
        %459 = vadd.xlane.f32.xlu0 %v444
        %v460 = vpop.xlane.xlu0 %459
        %461 = vadd.xlane.f32.xlu0 %v446
        %v462 = vpop.xlane.xlu0 %461
        %v463 = vrcp.pop %v448
        %v464 = vrcp.pop %v450
        %v465 = vrcp.pop %v452
        %v466 = vrcp.pop %v454
        %v467 = vrcp.pop %v456
        %v468 = vrcp.pop %v458
        %v469 = vrcp.pop %v460
        %v470 = vrcp.pop %v462
        %v471 = vmul.f32 %v432, %v463
        %v472 = vmul.f32 %v434, %v464
        %v473 = vmul.f32 %v436, %v465
        %v474 = vmul.f32 %v438, %v466
        %v475 = vmul.f32 %v440, %v467
        %v476 = vmul.f32 %v442, %v468
        %v477 = vmul.f32 %v444, %v469
        %v478 = vmul.f32 %v446, %v470
        %479 = vst [vmem:[%s218] sm:$0xff] %v471
        %480 = vst [vmem:[%s218 + $0x8] sm:$0xff] %v472
        %481 = vst [vmem:[%s218 + $0x10] sm:$0xff] %v473
        %482 = vst [vmem:[%s218 + $0x18] sm:$0xff] %v474
        %483 = vst [vmem:[%s218 + $0x20] sm:$0xff] %v475
        %484 = vst [vmem:[%s218 + $0x28] sm:$0xff] %v476
        %485 = vst [vmem:[%s218 + $0x30] sm:$0xff] %v477
        %486 = vst [vmem:[%s218 + $0x38] sm:$0xff] %v478
        %s487 = sand.u32 %s137, 1
        %s488 = scalar_lea.sflag [#allocation3], %s487
        %s489 = sand.u32 %s137, 1
        %s490 = smul.addr %s489, 64
        %s491 = scalar_lea.vmem [#allocation2], %s490
        // Predicated region
        $region41: #{tpu_custom_call.1} parent=39 // pred_check
          %p492 = pneg %p147
        $region42: #{tpu_custom_call.1} parent=39 // pred_check_branch
          %494 = sbr.rel (%p492) target = $region44
        $region43: #{tpu_custom_call.1} parent=39 // pred_region
          %s495 = smul.u32 8, %s19
          %497 = vsyncadd %s488, 0
          %s498 = smul.addr %s495, 8
          %s499 = scalar_lea.hbm %s5, %s498
          %s500 = sshll.u32 %s491, 4
          %s501 = int_to_ptr.vmem [resolvable:$true] %s500
          %s502 = sshll.u32 %s499, 4
          %s503 = int_to_ptr.hbm [resolvable:$true] %s502
          %508 = dma.vmem_to_hbm [thread:$0]  %s501, 1024, %s503, %s488, 128, 128, 8
        $region44: #{tpu_custom_call.1} parent=39 // pred_fallthru
          _
      $region40: #{tpu_custom_call.1} parent=5 // pred_fallthru
        _
      %p509 = scmp.le.s32.totalorder 2, %s14
      // Predicated region
      $region45: #{tpu_custom_call.1} parent=5 // pred_check
        %p510 = pneg %p509
      $region46: #{tpu_custom_call.1} parent=5 // pred_check_branch
        %512 = sbr.rel (%p510) target = $region48
      $region47: #{tpu_custom_call.1} parent=5 // pred_region
        %s513 = ssub.s32 %s14, 2
        // Predicated region
        $region49: #{tpu_custom_call.1} parent=47 // pred_check
          %p514 = pneg %p153
        $region50: #{tpu_custom_call.1} parent=47 // pred_check_branch
          %516 = sbr.rel (%p514) target = $region52
        $region51: #{tpu_custom_call.1} parent=47 // pred_region
          %s517 = sand.u32 %s138, 1
          %s518 = scalar_lea.sflag [#allocation3], %s517
          %s519 = sand.u32 %s138, 1
          %s520 = smul.addr %s519, 64
          %s521 = scalar_lea.vmem [#allocation2], %s520
          %523 = dma.done %s518, 1024
        $region52: #{tpu_custom_call.1} parent=47 // pred_fallthru
          _
      $region48: #{tpu_custom_call.1} parent=5 // pred_fallthru
        _
    $region6: #{tpu_custom_call.1} parent=1 // loop_footer
      %s18 = sadd.s32 1, %s14
    $region7: #{tpu_custom_call.1} parent=1 // loop_footer_branch
      %13 = sbr.rel target = $region3
    $region8: #{tpu_custom_call.1} parent=1 // loop_exit
      _
    %524 = vsyncpa [#allocation3], 1
    %s525 = scalar_lea.sflag [#allocation3], 1
    %526 = vsyncpa %s525, 1

// kernel: tpu_custom_call.1
$region0: #{tpu_custom_call.1}
  #allocation0 [shape = 'u32[]', space=smem, size = 0x4, offset = 0x4, fixed_abs, tag = 'smem constant byte address 0x4 - core index']
  #allocation1 [shape = 'u32[72,128]{1,0:T(1,128)}', space=vmem, size = 0x9000, scoped, tag = 'internal scratch']
  %s0 = inlined_call_operand.vmem [shape: f32[256,64], index: 0, kind: input, shape index: {}]
  %s1 = inlined_call_operand.vmem [shape: bf16[64,32], index: 1, kind: input, shape index: {}]
  %s2 = inlined_call_operand.vmem [shape: f32[1,32], index: 2, kind: input, shape index: {}]
  %s3 = inlined_call_operand.vmem [shape: bf16[32,128], index: 3, kind: input, shape index: {}]
  %s4 = inlined_call_operand.vmem [shape: f32[1,128], index: 4, kind: input, shape index: {}]
  %s5 = inlined_call_operand.hbm [shape: f32[256,128], index: 5, kind: output, shape index: {}]
  %s6 = sld [smem:[#allocation0]]
  $region53: #{tpu_custom_call.1} parent=0
    _
  %s8 = ssub.s32 1, %s6
  %s9 = scalar_select 0, %s8, %s6
  $region1: #{tpu_custom_call.1} parent=0
    #allocation2 [shape = 'u8[65536]{0}', space=vmem, size = 0x10000, scoped, tag = 'output window, operand 0']
    #allocation3 [shape = 's32[2]{0}', space=sflag, size = 0x8, scoped, tag = 'scoped memory for tpu_custom_call.1']
    %10 = vsyncpa [#allocation3], 0
    %s11 = scalar_lea.sflag [#allocation3], 1
    %12 = vsyncpa %s11, 0
    loop: start=0, step=1, limit=6
    $region2: #{tpu_custom_call.1} parent=1 // loop_pre_header
      _
    $region3: #{tpu_custom_call.1} parent=1 // loop_header
      %s14 = sphi 0, %s18
      %p15 = scmp.ge.s32.totalorder %s14, 6
      %s24 = sphi 0, %s26
      %s27 = sphi 0, %s24
      %s28 = sphi 0, %s27
      %s44 = sphi 0, %s28
      %s48 = sphi 0, %s48
      %s50 = sphi 0, %s48
      %s51 = sphi 0, %s50
      %s65 = sphi 0, %s51
      %s69 = sphi 0, %s69
      %s71 = sphi 0, %s69
      %s72 = sphi 0, %s71
      %s86 = sphi 0, %s72
      %s90 = sphi 0, %s90
      %s92 = sphi 0, %s90
      %s93 = sphi 0, %s92
      %s107 = sphi 0, %s93
      %s111 = sphi 0, %s111
      %s113 = sphi 0, %s111
      %s114 = sphi 0, %s113
      %s128 = sphi 0, %s114
      %s134 = sphi 0, %s136
      %s137 = sphi 0, %s134
      %s138 = sphi 0, %s137
      %s154 = sphi 0, %s138
    $region4: #{tpu_custom_call.1} parent=1 // loop_header_branch
      %17 = sbr.rel (%p15) target = $region8
    $region5: #{tpu_custom_call.1} parent=1 // loop_body
      %s19 = ssub.s32 %s14, 1
      %s20 = ssub.s32 %s14, 2
      %s21 = sadd.s32 %s14, 1
      %s22 = ssub.s32 %s14, %s21
      %p23 = scmp.eq.s32.totalorder %s22, 0
      %s25 = sadd.s32 %s24, 1
      %s26 = scalar_select %p23, %s24, %s25
      %p29 = pneg %p23
      %p30 = scmp.eq.s32.totalorder %s14, 3
      %p31 = por %p29, %p30
      %p32 = scmp.ne.s32.totalorder %s24, %s27
      %p33 = scmp.eq.s32.totalorder %s14, 0
      %p34 = por %p32, %p33
      %p35 = scmp.ne.s32.totalorder %s24, %s27
      %p36 = scmp.eq.s32.totalorder %s19, 3
      %p37 = por %p35, %p36
      %p38 = scmp.ne.s32.totalorder %s27, %s28
      %p39 = scmp.eq.s32.totalorder %s19, 0
      %p40 = por %p38, %p39
      %p41 = scmp.ne.s32.totalorder %s27, %s28
      %p42 = scmp.eq.s32.totalorder %s20, 3
      %p43 = por %p41, %p42
      %p45 = scmp.ne.s32.totalorder %s28, %s44
      %p46 = scmp.eq.s32.totalorder %s20, 0
      %p47 = por %p45, %p46
      %s49 = sadd.s32 %s48, 1
      %p52 = scmp.eq.s32.totalorder %s14, 3
      %p53 = scmp.ne.s32.totalorder %s48, %s50
      %p54 = scmp.eq.s32.totalorder %s14, 0
      %p55 = por %p53, %p54
      %p56 = scmp.ne.s32.totalorder %s48, %s50
      %p57 = scmp.eq.s32.totalorder %s19, 3
      %p58 = por %p56, %p57
      %p59 = scmp.ne.s32.totalorder %s50, %s51
      %p60 = scmp.eq.s32.totalorder %s19, 0
      %p61 = por %p59, %p60
      %p62 = scmp.ne.s32.totalorder %s50, %s51
      %p63 = scmp.eq.s32.totalorder %s20, 3
      %p64 = por %p62, %p63
      %p66 = scmp.ne.s32.totalorder %s51, %s65
      %p67 = scmp.eq.s32.totalorder %s20, 0
      %p68 = por %p66, %p67
      %s70 = sadd.s32 %s69, 1
      %p73 = scmp.eq.s32.totalorder %s14, 3
      %p74 = scmp.ne.s32.totalorder %s69, %s71
      %p75 = scmp.eq.s32.totalorder %s14, 0
      %p76 = por %p74, %p75
      %p77 = scmp.ne.s32.totalorder %s69, %s71
      %p78 = scmp.eq.s32.totalorder %s19, 3
      %p79 = por %p77, %p78
      %p80 = scmp.ne.s32.totalorder %s71, %s72
      %p81 = scmp.eq.s32.totalorder %s19, 0
      %p82 = por %p80, %p81
      %p83 = scmp.ne.s32.totalorder %s71, %s72
      %p84 = scmp.eq.s32.totalorder %s20, 3
      %p85 = por %p83, %p84
      %p87 = scmp.ne.s32.totalorder %s72, %s86
      %p88 = scmp.eq.s32.totalorder %s20, 0
      %p89 = por %p87, %p88
      %s91 = sadd.s32 %s90, 1
      %p94 = scmp.eq.s32.totalorder %s14, 3
      %p95 = scmp.ne.s32.totalorder %s90, %s92
      %p96 = scmp.eq.s32.totalorder %s14, 0
      %p97 = por %p95, %p96
      %p98 = scmp.ne.s32.totalorder %s90, %s92
      %p99 = scmp.eq.s32.totalorder %s19, 3
      %p100 = por %p98, %p99
      %p101 = scmp.ne.s32.totalorder %s92, %s93
      %p102 = scmp.eq.s32.totalorder %s19, 0
      %p103 = por %p101, %p102
      %p104 = scmp.ne.s32.totalorder %s92, %s93
      %p105 = scmp.eq.s32.totalorder %s20, 3
      %p106 = por %p104, %p105
      %p108 = scmp.ne.s32.totalorder %s93, %s107
      %p109 = scmp.eq.s32.totalorder %s20, 0
      %p110 = por %p108, %p109
      %s112 = sadd.s32 %s111, 1
      %p115 = scmp.eq.s32.totalorder %s14, 3
      %p116 = scmp.ne.s32.totalorder %s111, %s113
      %p117 = scmp.eq.s32.totalorder %s14, 0
      %p118 = por %p116, %p117
      %p119 = scmp.ne.s32.totalorder %s111, %s113
      %p120 = scmp.eq.s32.totalorder %s19, 3
      %p121 = por %p119, %p120
      %p122 = scmp.ne.s32.totalorder %s113, %s114
      %p123 = scmp.eq.s32.totalorder %s19, 0
      %p124 = por %p122, %p123
      %p125 = scmp.ne.s32.totalorder %s113, %s114
      %p126 = scmp.eq.s32.totalorder %s20, 3
      %p127 = por %p125, %p126
      %p129 = scmp.ne.s32.totalorder %s114, %s128
      %p130 = scmp.eq.s32.totalorder %s20, 0
      %p131 = por %p129, %p130
      %s132 = ssub.s32 %s14, %s21
      %p133 = scmp.eq.s32.totalorder %s132, 0
      %s135 = sadd.s32 %s134, 1
      %s136 = scalar_select %p133, %s134, %s135
      %p139 = pneg %p133
      %p140 = scmp.eq.s32.totalorder %s14, 3
      %p141 = por %p139, %p140
      %p142 = scmp.ne.s32.totalorder %s134, %s137
      %p143 = scmp.eq.s32.totalorder %s14, 0
      %p144 = por %p142, %p143
      %p145 = scmp.ne.s32.totalorder %s134, %s137
      %p146 = scmp.eq.s32.totalorder %s19, 3
      %p147 = por %p145, %p146
      %p148 = scmp.ne.s32.totalorder %s137, %s138
      %p149 = scmp.eq.s32.totalorder %s19, 0
      %p150 = por %p148, %p149
      %p151 = scmp.ne.s32.totalorder %s137, %s138
      %p152 = scmp.eq.s32.totalorder %s20, 3
      %p153 = por %p151, %p152
      %p155 = scmp.ne.s32.totalorder %s138, %s154
      %p156 = scmp.eq.s32.totalorder %s20, 0
      %p157 = por %p155, %p156
      %p158 = scmp.le.s32.totalorder 1, %s14
      %p159 = scmp.lt.s32.totalorder %s14, 5
      %p160 = pnand %p158, %p159
      %p161 = pneg %p160
      // Predicated region
      $region9: #{tpu_custom_call.1} parent=5 // pred_check
        _
      $region10: #{tpu_custom_call.1} parent=5 // pred_check_branch
        %163 = sbr.rel (%p160) target = $region12
      $region11: #{tpu_custom_call.1} parent=5 // pred_region
        %s164 = ssub.s32 %s14, 1
        // Predicated region
        $region13: #{tpu_custom_call.1} parent=11 // pred_check
          %p165 = pneg %p61
        $region14: #{tpu_custom_call.1} parent=11 // pred_check_branch
          %167 = sbr.rel (%p165) target = $region16
        $region15: #{tpu_custom_call.1} parent=11 // pred_region
          _
        $region16: #{tpu_custom_call.1} parent=11 // pred_fallthru
          _
        // Predicated region
        $region17: #{tpu_custom_call.1} parent=11 // pred_check
          %p168 = pneg %p82
        $region18: #{tpu_custom_call.1} parent=11 // pred_check_branch
          %170 = sbr.rel (%p168) target = $region20
        $region19: #{tpu_custom_call.1} parent=11 // pred_region
          _
        $region20: #{tpu_custom_call.1} parent=11 // pred_fallthru
          _
        // Predicated region
        $region21: #{tpu_custom_call.1} parent=11 // pred_check
          %p171 = pneg %p103
        $region22: #{tpu_custom_call.1} parent=11 // pred_check_branch
          %173 = sbr.rel (%p171) target = $region24
        $region23: #{tpu_custom_call.1} parent=11 // pred_region
          _
        $region24: #{tpu_custom_call.1} parent=11 // pred_fallthru
          _
        // Predicated region
        $region25: #{tpu_custom_call.1} parent=11 // pred_check
          %p174 = pneg %p124
        $region26: #{tpu_custom_call.1} parent=11 // pred_check_branch
          %176 = sbr.rel (%p174) target = $region28
        $region27: #{tpu_custom_call.1} parent=11 // pred_region
          _
        $region28: #{tpu_custom_call.1} parent=11 // pred_fallthru
          _
      $region12: #{tpu_custom_call.1} parent=5 // pred_fallthru
        _
      %p177 = scmp.lt.s32.totalorder %s14, 4
      // Predicated region
      $region29: #{tpu_custom_call.1} parent=5 // pred_check
        %p178 = pneg %p177
      $region30: #{tpu_custom_call.1} parent=5 // pred_check_branch
        %180 = sbr.rel (%p178) target = $region32
      $region31: #{tpu_custom_call.1} parent=5 // pred_region
        // Predicated region
        $region33: #{tpu_custom_call.1} parent=31 // pred_check
          %p181 = pneg %p34
        $region34: #{tpu_custom_call.1} parent=31 // pred_check_branch
          %183 = sbr.rel (%p181) target = $region36
        $region35: #{tpu_custom_call.1} parent=31 // pred_region
          %s184 = smul.u32 8, %s14
          %p185 = scmp.lt.s32.totalorder %s184, 31
          %s186 = scalar_select %p185, %s184, 31
          %s187 = smul.addr %s186, 8
          %s188 = scalar_lea.vmem %s0, %s187
          %s189 = smul.u32 8, %s14
        $region36: #{tpu_custom_call.1} parent=31 // pred_fallthru
          _
      $region32: #{tpu_custom_call.1} parent=5 // pred_fallthru
        _
      %p190 = scmp.le.s32.totalorder 1, %s14
      %p191 = scmp.lt.s32.totalorder %s14, 5
      %p192 = pnand %p190, %p191
      %p193 = pneg %p192
      // Predicated region
      $region37: #{tpu_custom_call.1} parent=5 // pred_check
        _
      $region38: #{tpu_custom_call.1} parent=5 // pred_check_branch
        %195 = sbr.rel (%p192) target = $region40
      $region39: #{tpu_custom_call.1} parent=5 // pred_region
        %s196 = ssub.s32 %s14, 1
        %s197 = smul.u32 8, %s19
        %p198 = scmp.lt.s32.totalorder %s197, 31
        %s199 = scalar_select %p198, %s197, 31
        %s200 = smul.addr %s199, 8
        %s201 = scalar_lea.vmem %s0, %s200
        %p202 = pneg %p40
        %p203 = pneg %p37
        %p204 = pneg %p61
        %p205 = pneg %p58
        %p206 = pneg %p82
        %p207 = pneg %p79
        %p208 = pneg %p103
        %p209 = pneg %p100
        %p210 = pneg %p124
        %p211 = pneg %p121
        %p212 = pneg %p150
        %p213 = pneg %p147
        %s214 = sand.u32 %s137, 1
        %s215 = scalar_lea.sflag [#allocation3], %s214
        %s216 = sand.u32 %s137, 1
        %s217 = smul.addr %s216, 64
        %s218 = scalar_lea.vmem [#allocation2], %s217
        %s219 = smul.u32 8, %s19
        %p220 = scmp.lt.s32.totalorder %s219, 31
        %s221 = scalar_select %p220, %s219, 31
        %s222 = smul.addr %s221, 8
        %s223 = scalar_lea.vmem %s0, %s222
        %s224 = smul.u32 8, %s19
        %s225 = smul.u32 8, %s19
        %v227 = vld [vmem:[%s223] sm:$0xff]
        %v228 = vld [vmem:[%s223 + $0x8] sm:$0xff]
        %v229 = vld [vmem:[%s223 + $0x10] sm:$0xff]
        %v230 = vld [vmem:[%s223 + $0x18] sm:$0xff]
        %v231 = vld [vmem:[%s223 + $0x20] sm:$0xff]
        %v232 = vld [vmem:[%s223 + $0x28] sm:$0xff]
        %v233 = vld [vmem:[%s223 + $0x30] sm:$0xff]
        %v234 = vld [vmem:[%s223 + $0x38] sm:$0xff]
        %v235 = vpack.c.bf16 %v228, %v227
        %v236 = vpack.c.bf16 %v230, %v229
        %v237 = vpack.c.bf16 %v232, %v231
        %v238 = vpack.c.bf16 %v234, %v233
        %v239 = vld [vmem:[%s1] sm:$0xf]
        %v240 = vld [vmem:[%s1 + $0x4] sm:$0xf]
        %v241 = vld [vmem:[%s1 + $0x8] sm:$0xf]
        %v242 = vld [vmem:[%s1 + $0xc] sm:$0xf]
        %v243 = vld [vmem:[%s1 + $0x10] sm:$0xf]
        %v244 = vld [vmem:[%s1 + $0x14] sm:$0xf]
        %v245 = vld [vmem:[%s1 + $0x18] sm:$0xf]
        %v246 = vld [vmem:[%s1 + $0x1c] sm:$0xf]
        %v247 = vld [vmem:[%s2] sm:$0x1]
        %v249 = vperm.slane %v247, 0
        %v259 = vunpack.c.l.b16 %v239
        %v260 = vunpack.c.l.b16 %v240
        %v261 = vunpack.c.l.b16 %v241
        %v262 = vunpack.c.l.b16 %v242
        %v263 = vunpack.c.l.b16 %v243
        %v264 = vunpack.c.l.b16 %v244
        %v265 = vunpack.c.l.b16 %v245
        %v266 = vunpack.c.l.b16 %v246
        %v267 = vpack.c.b16 %v260, %v259
        %v268 = vpack.c.b16 %v262, %v261
        %v269 = vpack.c.b16 %v264, %v263
        %v270 = vpack.c.b16 %v266, %v265
        %vm275 = vcmask 523264
        %v277 = vsel %vm275, %v235, 0
        %v280 = vsel %vm275, %v236, 0
        %v283 = vsel %vm275, %v237, 0
        %v286 = vsel %vm275, %v238, 0
        %288 = vmatpush.bf16.msra.mxu0 0
        %289 = vmatpush.bf16.msra.mxu0 0
        %290 = vmatpush.bf16.msra.mxu0 0
        %291 = vmatpush.bf16.msra.mxu0 0
        %292 = vmatpush.bf16.msra.mxu0 %v270
        %293 = vmatpush.bf16.msra.mxu0 %v269
        %294 = vmatpush.bf16.msra.mxu0 %v268
        %295 = vmatpush.bf16.msra.mxu0 %v267
        %296 = vmatmul.bf16.gmra.mxu0 %v277
        %v297 = vpop.f32.mrf.mxu0
        %v298 = vadd.f32 %v249, %v297
        %v299 = vpop.f32.mrf.mxu0
        %v300 = vadd.f32 %v249, %v299
        %301 = vmatmul.bf16.gmra.mxu0 %v280
        %v302 = vpop.f32.mrf.mxu0
        %v303 = vadd.f32 %v249, %v302
        %v304 = vpop.f32.mrf.mxu0
        %v305 = vadd.f32 %v249, %v304
        %306 = vmatmul.bf16.gmra.mxu0 %v283
        %v307 = vpop.f32.mrf.mxu0
        %v308 = vadd.f32 %v249, %v307
        %v309 = vpop.f32.mrf.mxu0
        %v310 = vadd.f32 %v249, %v309
        %311 = vmatmul.bf16.gmra.mxu0 %v286
        %v312 = vpop.f32.mrf.mxu0
        %v313 = vadd.f32 %v249, %v312
        %v314 = vpop.f32.mrf.mxu0
        %v315 = vadd.f32 %v249, %v314
        %316 = vdwg.mxu0
        %vm317 = vcmp.gt.f32.partialorder %v298, 0.0
        %vm318 = vcmp.gt.f32.partialorder %v300, 0.0
        %vm319 = vcmp.gt.f32.partialorder %v303, 0.0
        %vm320 = vcmp.gt.f32.partialorder %v305, 0.0
        %vm321 = vcmp.gt.f32.partialorder %v308, 0.0
        %vm322 = vcmp.gt.f32.partialorder %v310, 0.0
        %vm323 = vcmp.gt.f32.partialorder %v313, 0.0
        %vm324 = vcmp.gt.f32.partialorder %v315, 0.0
        %v325 = vmul.f32 %v298, 0.01
        %v326 = vmul.f32 %v300, 0.01
        %v327 = vmul.f32 %v303, 0.01
        %v328 = vmul.f32 %v305, 0.01
        %v329 = vmul.f32 %v308, 0.01
        %v330 = vmul.f32 %v310, 0.01
        %v331 = vmul.f32 %v313, 0.01
        %v332 = vmul.f32 %v315, 0.01
        %v333 = vsel %vm317, %v298, %v325
        %v334 = vsel %vm318, %v300, %v326
        %v335 = vsel %vm319, %v303, %v327
        %v336 = vsel %vm320, %v305, %v328
        %v337 = vsel %vm321, %v308, %v329
        %v338 = vsel %vm322, %v310, %v330
        %v339 = vsel %vm323, %v313, %v331
        %v340 = vsel %vm324, %v315, %v332
        %v341 = vpack.c.bf16 %v334, %v333
        %v342 = vpack.c.bf16 %v336, %v335
        %v343 = vpack.c.bf16 %v338, %v337
        %v344 = vpack.c.bf16 %v340, %v339
        %v345 = vld [vmem:[%s3] sm:$0xf]
        %v346 = vld [vmem:[%s3 + $0x4] sm:$0xf]
        %v347 = vld [vmem:[%s3 + $0x8] sm:$0xf]
        %v348 = vld [vmem:[%s3 + $0xc] sm:$0xf]
        %v349 = vld [vmem:[%s4] sm:$0x1]
        %v351 = vperm.slane %v349, 0
        %v357 = vunpack.c.l.b16 %v345
        %v358 = vunpack.c.l.b16 %v346
        %v359 = vunpack.c.l.b16 %v347
        %v360 = vunpack.c.l.b16 %v348
        %v361 = vpack.c.b16 %v358, %v357
        %v362 = vpack.c.b16 %v360, %v359
        %vm365 = vcmask 261120
        %v367 = vsel %vm365, %v341, 0
        %v370 = vsel %vm365, %v342, 0
        %v373 = vsel %vm365, %v343, 0
        %v376 = vsel %vm365, %v344, 0
        %378 = vmatpush.bf16.msra.mxu0 0
        %379 = vmatpush.bf16.msra.mxu0 0
        %380 = vmatpush.bf16.msra.mxu0 0
        %381 = vmatpush.bf16.msra.mxu0 0
        %382 = vmatpush.bf16.msra.mxu0 0
        %383 = vmatpush.bf16.msra.mxu0 0
        %384 = vmatpush.bf16.msra.mxu0 %v362
        %385 = vmatpush.bf16.msra.mxu0 %v361
        %386 = vmatmul.bf16.gmra.mxu0 %v367
        %v387 = vpop.f32.mrf.mxu0
        %v388 = vadd.f32 %v351, %v387
        %v389 = vpop.f32.mrf.mxu0
        %v390 = vadd.f32 %v351, %v389
        %391 = vmatmul.bf16.gmra.mxu0 %v370
        %v392 = vpop.f32.mrf.mxu0
        %v393 = vadd.f32 %v351, %v392
        %v394 = vpop.f32.mrf.mxu0
        %v395 = vadd.f32 %v351, %v394
        %396 = vmatmul.bf16.gmra.mxu0 %v373
        %v397 = vpop.f32.mrf.mxu0
        %v398 = vadd.f32 %v351, %v397
        %v399 = vpop.f32.mrf.mxu0
        %v400 = vadd.f32 %v351, %v399
        %401 = vmatmul.bf16.gmra.mxu0 %v376
        %v402 = vpop.f32.mrf.mxu0
        %v403 = vadd.f32 %v351, %v402
        %v404 = vpop.f32.mrf.mxu0
        %v405 = vadd.f32 %v351, %v404
        %406 = vdwg.mxu0
        %407 = vmax.xlane.f32.xlu0 %v388
        %v408 = vpop.xlane.xlu0 %407
        %409 = vmax.xlane.f32.xlu0 %v390
        %v410 = vpop.xlane.xlu0 %409
        %411 = vmax.xlane.f32.xlu0 %v393
        %v412 = vpop.xlane.xlu0 %411
        %413 = vmax.xlane.f32.xlu0 %v395
        %v414 = vpop.xlane.xlu0 %413
        %415 = vmax.xlane.f32.xlu0 %v398
        %v416 = vpop.xlane.xlu0 %415
        %417 = vmax.xlane.f32.xlu0 %v400
        %v418 = vpop.xlane.xlu0 %417
        %419 = vmax.xlane.f32.xlu0 %v403
        %v420 = vpop.xlane.xlu0 %419
        %421 = vmax.xlane.f32.xlu0 %v405
        %v422 = vpop.xlane.xlu0 %421
        %v423 = vsub.f32 %v388, %v408
        %v424 = vsub.f32 %v390, %v410
        %v425 = vsub.f32 %v393, %v412
        %v426 = vsub.f32 %v395, %v414
        %v427 = vsub.f32 %v398, %v416
        %v428 = vsub.f32 %v400, %v418
        %v429 = vsub.f32 %v403, %v420
        %v430 = vsub.f32 %v405, %v422
        %v431 = vmul.f32 %v423, 1.442695
        %v432 = vpow.pop %v431
        %v433 = vmul.f32 %v424, 1.442695
        %v434 = vpow.pop %v433
        %v435 = vmul.f32 %v425, 1.442695
        %v436 = vpow.pop %v435
        %v437 = vmul.f32 %v426, 1.442695
        %v438 = vpow.pop %v437
        %v439 = vmul.f32 %v427, 1.442695
        %v440 = vpow.pop %v439
        %v441 = vmul.f32 %v428, 1.442695
        %v442 = vpow.pop %v441
        %v443 = vmul.f32 %v429, 1.442695
        %v444 = vpow.pop %v443
        %v445 = vmul.f32 %v430, 1.442695
        %v446 = vpow.pop %v445
        %447 = vadd.xlane.f32.xlu0 %v432
        %v448 = vpop.xlane.xlu0 %447
        %449 = vadd.xlane.f32.xlu0 %v434
        %v450 = vpop.xlane.xlu0 %449
        %451 = vadd.xlane.f32.xlu0 %v436
        %v452 = vpop.xlane.xlu0 %451
        %453 = vadd.xlane.f32.xlu0 %v438
        %v454 = vpop.xlane.xlu0 %453
        %455 = vadd.xlane.f32.xlu0 %v440
        %v456 = vpop.xlane.xlu0 %455
        %457 = vadd.xlane.f32.xlu0 %v442
        %v458 = vpop.xlane.xlu0 %457
        %459 = vadd.xlane.f32.xlu0 %v444
        %v460 = vpop.xlane.xlu0 %459
        %461 = vadd.xlane.f32.xlu0 %v446
        %v462 = vpop.xlane.xlu0 %461
        %v463 = vrcp.pop %v448
        %v464 = vrcp.pop %v450
        %v465 = vrcp.pop %v452
        %v466 = vrcp.pop %v454
        %v467 = vrcp.pop %v456
        %v468 = vrcp.pop %v458
        %v469 = vrcp.pop %v460
        %v470 = vrcp.pop %v462
        %v471 = vmul.f32 %v432, %v463
        %v472 = vmul.f32 %v434, %v464
        %v473 = vmul.f32 %v436, %v465
        %v474 = vmul.f32 %v438, %v466
        %v475 = vmul.f32 %v440, %v467
        %v476 = vmul.f32 %v442, %v468
        %v477 = vmul.f32 %v444, %v469
        %v478 = vmul.f32 %v446, %v470
        %479 = vst [vmem:[%s218] sm:$0xff] %v471
        %480 = vst [vmem:[%s218 + $0x8] sm:$0xff] %v472
        %481 = vst [vmem:[%s218 + $0x10] sm:$0xff] %v473
        %482 = vst [vmem:[%s218 + $0x18] sm:$0xff] %v474
        %483 = vst [vmem:[%s218 + $0x20] sm:$0xff] %v475
        %484 = vst [vmem:[%s218 + $0x28] sm:$0xff] %v476
        %485 = vst [vmem:[%s218 + $0x30] sm:$0xff] %v477
        %486 = vst [vmem:[%s218 + $0x38] sm:$0xff] %v478
        %s487 = sand.u32 %s137, 1
        %s488 = scalar_lea.sflag [#allocation3], %s487
        %s489 = sand.u32 %s137, 1
        %s490 = smul.addr %s489, 64
        %s491 = scalar_lea.vmem [#allocation2], %s490
        // Predicated region
        $region41: #{tpu_custom_call.1} parent=39 // pred_check
          %p492 = pneg %p147
        $region42: #{tpu_custom_call.1} parent=39 // pred_check_branch
          %494 = sbr.rel (%p492) target = $region44
        $region43: #{tpu_custom_call.1} parent=39 // pred_region
          %s495 = smul.u32 8, %s19
          %497 = vsyncadd %s488, 0
          %s498 = smul.addr %s495, 8
          %s499 = scalar_lea.hbm %s5, %s498
          %s500 = sshll.u32 %s491, 4
          %s501 = int_to_ptr.vmem [resolvable:$true] %s500
          %s502 = sshll.u32 %s499, 4
          %s503 = int_to_ptr.hbm [resolvable:$true] %s502
          %508 = dma.vmem_to_hbm [thread:$0]  %s501, 1024, %s503, %s488, 128, 128, 8
        $region44: #{tpu_custom_call.1} parent=39 // pred_fallthru
          _
      $region40: #{tpu_custom_call.1} parent=5 // pred_fallthru
        _
      %p509 = scmp.le.s32.totalorder 2, %s14
      // Predicated region
      $region45: #{tpu_custom_call.1} parent=5 // pred_check
        %p510 = pneg %p509
      $region46: #{tpu_custom_call.1} parent=5 // pred_check_branch
        %512 = sbr.rel (%p510) target = $region48
      $region47: #{tpu_custom_call.1} parent=5 // pred_region
        %s513 = ssub.s32 %s14, 2
        // Predicated region
        $region49: #{tpu_custom_call.1} parent=47 // pred_check
          %p514 = pneg %p153
        $region50: #{tpu_custom_call.1} parent=47 // pred_check_branch
          %516 = sbr.rel (%p514) target = $region52
        $region51: #{tpu_custom_call.1} parent=47 // pred_region
          %s517 = sand.u32 %s138, 1
          %s518 = scalar_lea.sflag [#allocation3], %s517
          %s519 = sand.u32 %s138, 1
          %s520 = smul.addr %s519, 64
          %s521 = scalar_lea.vmem [#allocation2], %s520
          %523 = dma.done %s518, 1024
        $region52: #{tpu_custom_call.1} parent=47 // pred_fallthru
          _
      $region48: #{tpu_custom_call.1} parent=5 // pred_fallthru
        _
    $region6: #{tpu_custom_call.1} parent=1 // loop_footer
      %s18 = sadd.s32 1, %s14
    $region7: #{tpu_custom_call.1} parent=1 // loop_footer_branch
      %13 = sbr.rel target = $region3
    $region8: #{tpu_custom_call.1} parent=1 // loop_exit
      _
    %524 = vsyncpa [#allocation3], 1
    %s525 = scalar_lea.sflag [#allocation3], 1
    %526 = vsyncpa %s525, 1

</llo_original>
